<compile_context>
chip_gen: v7x
topology: tpu7x:2x2x1
jax: 0.10.0
libtpu: 0.0.40
codegen_flags: <defaults>
</compile_context>

<pallas_src>
import functools
import operator

import jax
import jax.numpy as jnp
from jax import lax
from jax.experimental import pallas as pl
from jax.experimental.pallas import tpu as pltpu


# ----------------------------- fused Pallas kernel ---------------------------
def _tied_head_body(h_ref, x_ref, emb_ref, cls_ref, o_ref, n_word_blocks):
    """Grid = (word_col_tiles + 1, row_tiles); vocab axis leads.

    Column step j < n_word_blocks: one word-logit tile  h @ emb_tile^T.
    Final column step: all class logits  x @ class_w^T (class_w zero-padded to the tile
    width; padded columns fall outside the logical output and are clipped on writeback)."""
    j = pl.program_id(0)

    @pl.when(j < n_word_blocks)
    def _word():
        o_ref[...] = lax.dot_general(
            h_ref[...], emb_ref[...],
            dimension_numbers=(((1,), (1,)), ((), ())),   # contract emb_dim; weight as stored
            preferred_element_type=jnp.float32,
        ).astype(o_ref.dtype)

    @pl.when(j >= n_word_blocks)
    def _class():
        o_ref[...] = lax.dot_general(
            x_ref[...], cls_ref[...],
            dimension_numbers=(((1,), (1,)), ((), ())),   # contract input_dim; weight as stored
            preferred_element_type=jnp.float32,
        ).astype(o_ref.dtype)


def _tied_head_kernel_proj(h_ref, x_ref, emb_ref, cls_ref, o_ref, *, n_word_blocks):
    _tied_head_body(h_ref, x_ref, emb_ref, cls_ref, o_ref, n_word_blocks)


def _tied_head_kernel_shared(h_ref, emb_ref, cls_ref, o_ref, *, n_word_blocks):
    # input_dim == emb_dim: word and class matmuls read the same activation block.
    _tied_head_body(h_ref, h_ref, emb_ref, cls_ref, o_ref, n_word_blocks)


# --------------------------- parameter preparation ---------------------------
def _vmem_physical_bytes():
    try:
        return int(pltpu.get_tpu_info().vmem_capacity_bytes)
    except Exception:
        return 64 << 20          # conservative default (v7x-sized VMEM)


def prepare_tied_head_params(tied_emb, class_w, proj_w=None, *, tn=None):
    """One-time prep: cast static weights to bf16, pick the vocab (column) tile width,
    and zero-pad class_w rows up to it so the class step produces one full tile."""
    num_words, emb_dim = tied_emb.shape
    num_classes, input_dim = class_w.shape
    if proj_w is not None:
        assert proj_w.shape == (emb_dim, input_dim)
    else:
        assert input_dim == emb_dim

    if tn is None:
        # Widest 128-multiple tile dividing the vocab head whose double-buffered weight
        # blocks (emb tile + padded class tile) stay under ~24 MiB, leaving room for
        # activation / output tiles on every TPU generation.
        weight_budget = 24 << 20
        for t in (2048, 1024, 512, 256, 128):
            if num_words % t == 0 and 2 * t * (emb_dim + input_dim) * 2 <= weight_budget:
                tn = t
                break
    assert tn is not None and num_words % tn == 0 and tn % 128 == 0, (
        "num_words (vocab head size) must be a multiple of 128; pad the tied embedding "
        "before calling prepare_tied_head_params")
    assert num_classes <= tn, "num_classes must fit in one column tile"

    cls_pad = jnp.zeros((tn, input_dim), jnp.bfloat16)
    cls_pad = cls_pad.at[:num_classes, :].set(class_w.astype(jnp.bfloat16))

    # TODO(synk): optional fp8 (v7x) / int8 (v6e, v5e) quantization of tied_emb with
    # per-tile scales would further halve the dominant weight stream; kept bf16 here.
    return dict(
        emb=tied_emb.astype(jnp.bfloat16),                 # (num_words, emb_dim), as stored
        cls=cls_pad,                                       # (tn, input_dim), zero-padded rows
        proj=None if proj_w is None else proj_w.astype(jnp.bfloat16),
        tn=tn, num_words=num_words, num_classes=num_classes,
        emb_dim=emb_dim, input_dim=input_dim,
    )


# ------------------------------ forward pass ---------------------------------
def tied_head_forward(x, params, *, out_dtype=jnp.float32):
    p = params
    tn, num_words, num_classes = p["tn"], p["num_words"], p["num_classes"]
    emb_dim, input_dim = p["emb_dim"], p["input_dim"]
    has_proj = p["proj"] is not None
    out_dim = num_words + num_classes
    out_bytes = jnp.dtype(out_dtype).itemsize

    m = functools.reduce(operator.mul, x.shape[:-1], 1)
    xb = x.reshape(m, input_dim).astype(jnp.bfloat16)

    if has_proj:
        # Tiny projection: overhead-dominated -> plain XLA, weight consumed as stored
        # (no transpose copy), f32 MXU accumulation, kept in bf16 for the fused kernel.
        h = lax.dot_general(
            xb, p["proj"], dimension_numbers=(((1,), (1,)), ((), ())),
            preferred_element_type=jnp.float32).astype(jnp.bfloat16)
    else:
        h = xb

    # ---- VMEM budget & row-tile selection -----------------------------------
    phys = _vmem_physical_bytes()
    cap = min(phys * 3 // 4, 100 << 20)    # ~48 MiB on v7x (64 MiB), ~96 MiB on v5e/v6e (128 MiB)

    def vmem_bytes(tm):
        b = 2 * tm * emb_dim * 2                    # h  (bf16, double-buffered)
        if has_proj:
            b += 2 * tm * input_dim * 2             # x  (bf16, double-buffered)
        b += 2 * tn * emb_dim * 2                   # tied-embedding tile
        b += 2 * tn * input_dim * 2                 # padded class-weight tile
        b += 2 * tm * tn * out_bytes                # output tile
        return b

    tm = None
    for t in (1024, 512, 256, 128):                 # big row tiles amortize per-step overhead
        if m % t == 0 and vmem_bytes(t) <= cap:
            tm = t
            break
    if tm is None:
        tm = m                                      # decode / small batch: one full-M block

    n_m = m // tm
    n_word_blocks = num_words // tn
    grid = (n_word_blocks + 1, n_m)                 # vocab axis leads (sharded across TCs)

    vmem_limit = int(min(max(vmem_bytes(tm) + (4 << 20), 32 << 20), cap))

    # Clamp the emb block index on the class step so it triggers no extra weight fetch.
    emb_map = lambda j, i: (jnp.minimum(j, n_word_blocks - 1), 0)

    if has_proj:
        kernel = functools.partial(_tied_head_kernel_proj, n_word_blocks=n_word_blocks)
        in_specs = [
            pl.BlockSpec((tm, emb_dim), lambda j, i: (i, 0)),      # h (word steps)
            pl.BlockSpec((tm, input_dim), lambda j, i: (i, 0)),    # x (class step)
            pl.BlockSpec((tn, emb_dim), emb_map),                  # tied embedding (streamed)
            pl.BlockSpec((tn, input_dim), lambda j, i: (0, 0)),    # padded class weight (resident)
        ]
        operands = (h, xb, p["emb"], p["cls"])
    else:
        kernel = functools.partial(_tied_head_kernel_shared, n_word_blocks=n_word_blocks)
        in_specs = [
            pl.BlockSpec((tm, emb_dim), lambda j, i: (i, 0)),      # shared activation block
            pl.BlockSpec((tn, emb_dim), emb_map),
            pl.BlockSpec((tn, input_dim), lambda j, i: (0, 0)),
        ]
        operands = (h, p["emb"], p["cls"])

    return pl.pallas_call(
        kernel,
        out_shape=jax.ShapeDtypeStruct((m, out_dim), out_dtype),
        grid_spec=pltpu.PrefetchScalarGridSpec(
            num_scalar_prefetch=0,
            grid=grid,
            in_specs=in_specs,
            # Single output slab: column block j covers [j*tn, (j+1)*tn). The final
            # (class) block extends past out_dim; its out-of-bounds tail is a boundary
            # block and is not written back.
            out_specs=pl.BlockSpec((tm, tn), lambda j, i: (i, j)),
        ),
        compiler_params=pltpu.CompilerParams(
            dimension_semantics=("parallel", "parallel"),
            vmem_limit_bytes=vmem_limit,
        ),
    )(*operands)


# ------------------------------- demo ----------------------------------------
if __name__ == "__main__":
    key = jax.random.PRNGKey(0)
    k_emb, k_proj, k_cls, k_x, k_emb2, k_cls2, k_x2 = jax.random.split(key, 7)

    # Config A: projection path (input_dim != emb_dim), multiple row AND vocab tiles,
    # num_classes not a multiple of 128 -> exercises boundary-block clipping of the
    # class column step across several row tiles.
    num_words, emb_dim = 384, 64
    input_dim, num_classes = 32, 16
    batch, seq = 3, 128                         # inp_sz = 384 -> 3 row tiles of 128

    tied_emb = jax.random.normal(k_emb, (num_words, emb_dim), jnp.float32) * 0.02
    proj_w = jax.random.normal(k_proj, (emb_dim, input_dim), jnp.float32) * 0.05
    class_w = jax.random.normal(k_cls, (num_classes, input_dim), jnp.float32) * 0.05
    x = jax.random.normal(k_x, (batch, seq, input_dim), jnp.float32)

    params = prepare_tied_head_params(tied_emb, class_w, proj_w)
    out = jax.block_until_ready(tied_head_forward(x, params))

    xf = x.reshape(batch * seq, input_dim)
    ref = jnp.concatenate([(xf @ proj_w.T) @ tied_emb.T, xf @ class_w.T], axis=1)
    assert out.shape == (batch * seq, num_words + num_classes)
    assert bool(jnp.all(jnp.isfinite(out)))
    assert jnp.allclose(out, ref, atol=3e-2, rtol=3e-2), float(jnp.max(jnp.abs(out - ref)))

    # Config B: tied path with input_dim == emb_dim (no projection -> shared-operand kernel),
    # decode-sized M (single full-M row block).
    num_words2, emb_dim2, num_classes2 = 256, 64, 16
    tied_emb2 = jax.random.normal(k_emb2, (num_words2, emb_dim2), jnp.float32) * 0.02
    class_w2 = jax.random.normal(k_cls2, (num_classes2, emb_dim2), jnp.float32) * 0.05
    x2 = jax.random.normal(k_x2, (2, 8, emb_dim2), jnp.float32)

    params2 = prepare_tied_head_params(tied_emb2, class_w2, None)
    out2 = jax.block_until_ready(tied_head_forward(x2, params2))

    xf2 = x2.reshape(16, emb_dim2)
    ref2 = jnp.concatenate([xf2 @ tied_emb2.T, xf2 @ class_w2.T], axis=1)
    assert out2.shape == (16, num_words2 + num_classes2)
    assert bool(jnp.all(jnp.isfinite(out2)))
    assert jnp.allclose(out2, ref2, atol=3e-2, rtol=3e-2), float(jnp.max(jnp.abs(out2 - ref2)))

    print("KERNEL_OK")
</pallas_src>

<mosaic_0001>
module attributes {stable_mosaic.version = 11 : i64} {
  func.func @_tied_head_kernel_proj(%arg0: i32, %arg1: i32, %arg2: memref<128x64xbf16, #tpu.memory_space<vmem>>, %arg3: memref<128x32xbf16, #tpu.memory_space<vmem>>, %arg4: memref<128x64xbf16, #tpu.memory_space<vmem>>, %arg5: memref<128x32xbf16, #tpu.memory_space<vmem>>, %arg6: memref<128x128xf32, #tpu.memory_space<vmem>>) attributes {dimension_semantics = [#tpu.dimension_semantics<parallel>, #tpu.dimension_semantics<parallel>], iteration_bounds = array<i64: 4, 3>, scalar_prefetch = 0 : i64, scratch_operands = 0 : i64, tpu.core_type = #tpu.core_type<tc>, window_params = [{transform_indices = @transform_0, window_bounds = array<i64: 128, 64>}, {transform_indices = @transform_1, window_bounds = array<i64: 128, 32>}, {transform_indices = @transform_2, window_bounds = array<i64: 128, 64>}, {pipeline_mode = #tpu.pipeline_mode<synchronous>, transform_indices = @transform_3, window_bounds = array<i64: 128, 32>}, {transform_indices = @transform_4, window_bounds = array<i64: 128, 128>}]} {
    %c3_i32 = arith.constant 3 : i32
    %0 = arith.cmpi slt, %arg0, %c3_i32 : i32
    %1 = arith.extui %0 : i1 to i32
    %c0_i32 = arith.constant 0 : i32
    %2 = arith.cmpi ne, %1, %c0_i32 : i32
    scf.if %2 {
      %c0 = arith.constant 0 : index
      %c0_2 = arith.constant 0 : index
      %6 = vector.load %arg2[%c0, %c0_2] : memref<128x64xbf16, #tpu.memory_space<vmem>>, vector<128x64xbf16>
      %c0_3 = arith.constant 0 : index
      %c0_4 = arith.constant 0 : index
      %7 = vector.load %arg4[%c0_3, %c0_4] : memref<128x64xbf16, #tpu.memory_space<vmem>>, vector<128x64xbf16>
      %cst = arith.constant dense<0.000000e+00> : vector<128x128xf32>
      %8 = tpu.matmul %6, %7, %cst {dimension_numbers = #tpu.dot_dimension_numbers<[1], [1], [0], [0], [0, 0, 1, 0], [], []>} : vector<128x64xbf16>, vector<128x64xbf16>, vector<128x128xf32> -> vector<128x128xf32>
      %c0_5 = arith.constant 0 : index
      %c0_6 = arith.constant 0 : index
      %9 = vector.load %arg6[%c0_5, %c0_6] : memref<128x128xf32, #tpu.memory_space<vmem>>, vector<128x128xf32>
      tpu.vector_store %arg6[%c0_5, %c0_6], %8 {strides = array<i32>} : memref<128x128xf32, #tpu.memory_space<vmem>>, vector<128x128xf32>,
    } else {
    }
    %c3_i32_0 = arith.constant 3 : i32
    %3 = arith.cmpi sge, %arg0, %c3_i32_0 : i32
    %4 = arith.extui %3 : i1 to i32
    %c0_i32_1 = arith.constant 0 : i32
    %5 = arith.cmpi ne, %4, %c0_i32_1 : i32
    scf.if %5 {
      %c0 = arith.constant 0 : index
      %c0_2 = arith.constant 0 : index
      %6 = vector.load %arg3[%c0, %c0_2] : memref<128x32xbf16, #tpu.memory_space<vmem>>, vector<128x32xbf16>
      %c0_3 = arith.constant 0 : index
      %c0_4 = arith.constant 0 : index
      %7 = vector.load %arg5[%c0_3, %c0_4] : memref<128x32xbf16, #tpu.memory_space<vmem>>, vector<128x32xbf16>
      %cst = arith.constant dense<0.000000e+00> : vector<128x128xf32>
      %8 = tpu.matmul %6, %7, %cst {dimension_numbers = #tpu.dot_dimension_numbers<[1], [1], [0], [0], [0, 0, 1, 0], [], []>} : vector<128x32xbf16>, vector<128x32xbf16>, vector<128x128xf32> -> vector<128x128xf32>
      %c0_5 = arith.constant 0 : index
      %c0_6 = arith.constant 0 : index
      %9 = vector.load %arg6[%c0_5, %c0_6] : memref<128x128xf32, #tpu.memory_space<vmem>>, vector<128x128xf32>
      tpu.vector_store %arg6[%c0_5, %c0_6], %8 {strides = array<i32>} : memref<128x128xf32, #tpu.memory_space<vmem>>, vector<128x128xf32>,
    } else {
    }
    return
  }
  func.func @transform_0(%arg0: i32, %arg1: i32) -> (i32, i32) {
    %c0_i32 = arith.constant 0 : i32
    %c0_i32_0 = arith.constant 0 : i32
    return %arg1, %c0_i32 : i32, i32
  }
  func.func @transform_1(%arg0: i32, %arg1: i32) -> (i32, i32) {
    %c0_i32 = arith.constant 0 : i32
    %c0_i32_0 = arith.constant 0 : i32
    return %arg1, %c0_i32 : i32, i32
  }
  func.func @transform_2(%arg0: i32, %arg1: i32) -> (i32, i32) {
    %c2_i32 = arith.constant 2 : i32
    %0 = arith.minsi %arg0, %c2_i32 : i32
    %c0_i32 = arith.constant 0 : i32
    %c0_i32_0 = arith.constant 0 : i32
    return %0, %c0_i32 : i32, i32
  }
  func.func @transform_3(%arg0: i32, %arg1: i32) -> (i32, i32) {
    %c0_i32 = arith.constant 0 : i32
    %c0_i32_0 = arith.constant 0 : i32
    %c0_i32_1 = arith.constant 0 : i32
    return %c0_i32, %c0_i32_0 : i32, i32
  }
  func.func @transform_4(%arg0: i32, %arg1: i32) -> (i32, i32) {
    %c0_i32 = arith.constant 0 : i32
    return %arg1, %arg0 : i32, i32
  }
}

</mosaic_0001>

<llo_original>
// kernel: tpu_custom_call.1
$region0: #{tpu_custom_call.1}
  #allocation0 [shape = 'u32[]', space=smem, size = 0x4, offset = 0x4, fixed_abs, tag = 'smem constant byte address 0x4 - core index']
  #allocation1 [shape = 'u32[144,128]{1,0:T(1,128)}', space=vmem, size = 0x12000, scoped, tag = 'internal scratch']
  %s0 = inlined_call_operand.vmem [shape: bf16[384,64], index: 0, kind: input, shape index: {}]
  %s1 = inlined_call_operand.vmem [shape: bf16[384,32], index: 1, kind: input, shape index: {}]
  %s2 = inlined_call_operand.vmem [shape: bf16[384,64], index: 2, kind: input, shape index: {}]
  %s3 = inlined_call_operand.vmem [shape: bf16[128,32], index: 3, kind: input, shape index: {}]
  %s4 = inlined_call_operand.vmem [shape: f32[384,400], index: 4, kind: output, shape index: {}]
  %s5 = sld [smem:[#allocation0]]
  $region91: #{tpu_custom_call.1} parent=0
    _
  %s7 = ssub.s32 1, %s5
  %s8 = scalar_select 0, %s7, %s5
  $region1: #{tpu_custom_call.1} parent=0
    #allocation2 [shape = 'u8[131072]{0}', space=vmem, size = 0x20000, scoped, tag = 'output window, operand 0']
    loop: start=0, step=1, limit=14
    $region2: #{tpu_custom_call.1} parent=1 // loop_pre_header
      _
    $region3: #{tpu_custom_call.1} parent=1 // loop_header
      %s10 = sphi 0, %s14
      %p11 = scmp.ge.s32.totalorder %s10, 14
      %s17 = sphi 0, %s29
      %s18 = sphi 0, %s25
      %s19 = sphi 0, %s17
      %s20 = sphi 0, %s18
      %s21 = sphi 0, %s19
      %s22 = sphi 0, %s20
      %s32 = sphi 0, %s34
      %s35 = sphi 0, %s32
      %s36 = sphi 0, %s35
      %s52 = sphi 0, %s36
      %s58 = sphi 0, %s60
      %s61 = sphi 0, %s58
      %s62 = sphi 0, %s61
      %s78 = sphi 0, %s62
      %s88 = sphi 0, %s90
      %s91 = sphi 0, %s88
      %s92 = sphi 0, %s91
      %s108 = sphi 0, %s92
      %s112 = sphi 0, %s112
      %s114 = sphi 0, %s112
      %s115 = sphi 0, %s114
      %s129 = sphi 0, %s115
      %s137 = sphi 0, %s139
      %s140 = sphi 0, %s137
      %s141 = sphi 0, %s140
      %s157 = sphi 0, %s141
    $region4: #{tpu_custom_call.1} parent=1 // loop_header_branch
      %13 = sbr.rel (%p11) target = $region8
    $region5: #{tpu_custom_call.1} parent=1 // loop_body
      %s15 = ssub.s32 %s10, 1
      %s16 = ssub.s32 %s10, 2
      %s23 = sadd.s32 1, %s18
      %p24 = scmp.ge.s32.totalorder %s23, 3
      %s25 = scalar_select %p24, 0, %s23
      %s26 = sadd.s32 1, %s17
      %s27 = scalar_select %p24, %s26, %s17
      %p28 = scmp.ge.s32.totalorder %s27, 4
      %s29 = scalar_select %p28, 0, %s27
      %s30 = ssub.s32 %s18, %s25
      %p31 = scmp.eq.s32.totalorder %s30, 0
      %s33 = sadd.s32 %s32, 1
      %s34 = scalar_select %p31, %s32, %s33
      %p37 = pneg %p31
      %p38 = scmp.eq.s32.totalorder %s10, 11
      %p39 = por %p37, %p38
      %p40 = scmp.ne.s32.totalorder %s32, %s35
      %p41 = scmp.eq.s32.totalorder %s10, 0
      %p42 = por %p40, %p41
      %p43 = scmp.ne.s32.totalorder %s32, %s35
      %p44 = scmp.eq.s32.totalorder %s15, 11
      %p45 = por %p43, %p44
      %p46 = scmp.ne.s32.totalorder %s35, %s36
      %p47 = scmp.eq.s32.totalorder %s15, 0
      %p48 = por %p46, %p47
      %p49 = scmp.ne.s32.totalorder %s35, %s36
      %p50 = scmp.eq.s32.totalorder %s16, 11
      %p51 = por %p49, %p50
      %p53 = scmp.ne.s32.totalorder %s36, %s52
      %p54 = scmp.eq.s32.totalorder %s16, 0
      %p55 = por %p53, %p54
      %s56 = ssub.s32 %s18, %s25
      %p57 = scmp.eq.s32.totalorder %s56, 0
      %s59 = sadd.s32 %s58, 1
      %s60 = scalar_select %p57, %s58, %s59
      %p63 = pneg %p57
      %p64 = scmp.eq.s32.totalorder %s10, 11
      %p65 = por %p63, %p64
      %p66 = scmp.ne.s32.totalorder %s58, %s61
      %p67 = scmp.eq.s32.totalorder %s10, 0
      %p68 = por %p66, %p67
      %p69 = scmp.ne.s32.totalorder %s58, %s61
      %p70 = scmp.eq.s32.totalorder %s15, 11
      %p71 = por %p69, %p70
      %p72 = scmp.ne.s32.totalorder %s61, %s62
      %p73 = scmp.eq.s32.totalorder %s15, 0
      %p74 = por %p72, %p73
      %p75 = scmp.ne.s32.totalorder %s61, %s62
      %p76 = scmp.eq.s32.totalorder %s16, 11
      %p77 = por %p75, %p76
      %p79 = scmp.ne.s32.totalorder %s62, %s78
      %p80 = scmp.eq.s32.totalorder %s16, 0
      %p81 = por %p79, %p80
      %p82 = scmp.lt.s32.totalorder %s17, 2
      %s83 = scalar_select %p82, %s17, 2
      %p84 = scmp.lt.s32.totalorder %s29, 2
      %s85 = scalar_select %p84, %s29, 2
      %s86 = ssub.s32 %s83, %s85
      %p87 = scmp.eq.s32.totalorder %s86, 0
      %s89 = sadd.s32 %s88, 1
      %s90 = scalar_select %p87, %s88, %s89
      %p93 = pneg %p87
      %p94 = scmp.eq.s32.totalorder %s10, 11
      %p95 = por %p93, %p94
      %p96 = scmp.ne.s32.totalorder %s88, %s91
      %p97 = scmp.eq.s32.totalorder %s10, 0
      %p98 = por %p96, %p97
      %p99 = scmp.ne.s32.totalorder %s88, %s91
      %p100 = scmp.eq.s32.totalorder %s15, 11
      %p101 = por %p99, %p100
      %p102 = scmp.ne.s32.totalorder %s91, %s92
      %p103 = scmp.eq.s32.totalorder %s15, 0
      %p104 = por %p102, %p103
      %p105 = scmp.ne.s32.totalorder %s91, %s92
      %p106 = scmp.eq.s32.totalorder %s16, 11
      %p107 = por %p105, %p106
      %p109 = scmp.ne.s32.totalorder %s92, %s108
      %p110 = scmp.eq.s32.totalorder %s16, 0
      %p111 = por %p109, %p110
      %s113 = sadd.s32 %s112, 1
      %p116 = scmp.eq.s32.totalorder %s10, 11
      %p117 = scmp.ne.s32.totalorder %s112, %s114
      %p118 = scmp.eq.s32.totalorder %s10, 0
      %p119 = por %p117, %p118
      %p120 = scmp.ne.s32.totalorder %s112, %s114
      %p121 = scmp.eq.s32.totalorder %s15, 11
      %p122 = por %p120, %p121
      %p123 = scmp.ne.s32.totalorder %s114, %s115
      %p124 = scmp.eq.s32.totalorder %s15, 0
      %p125 = por %p123, %p124
      %p126 = scmp.ne.s32.totalorder %s114, %s115
      %p127 = scmp.eq.s32.totalorder %s16, 11
      %p128 = por %p126, %p127
      %p130 = scmp.ne.s32.totalorder %s115, %s129
      %p131 = scmp.eq.s32.totalorder %s16, 0
      %p132 = por %p130, %p131
      %s133 = ssub.s32 %s18, %s25
      %s134 = ssub.s32 %s17, %s29
      %s135 = sor.u32 %s133, %s134
      %p136 = scmp.eq.s32.totalorder %s135, 0
      %s138 = sadd.s32 %s137, 1
      %s139 = scalar_select %p136, %s137, %s138
      %p142 = pneg %p136
      %p143 = scmp.eq.s32.totalorder %s10, 11
      %p144 = por %p142, %p143
      %p145 = scmp.ne.s32.totalorder %s137, %s140
      %p146 = scmp.eq.s32.totalorder %s10, 0
      %p147 = por %p145, %p146
      %p148 = scmp.ne.s32.totalorder %s137, %s140
      %p149 = scmp.eq.s32.totalorder %s15, 11
      %p150 = por %p148, %p149
      %p151 = scmp.ne.s32.totalorder %s140, %s141
      %p152 = scmp.eq.s32.totalorder %s15, 0
      %p153 = por %p151, %p152
      %p154 = scmp.ne.s32.totalorder %s140, %s141
      %p155 = scmp.eq.s32.totalorder %s16, 11
      %p156 = por %p154, %p155
      %p158 = scmp.ne.s32.totalorder %s141, %s157
      %p159 = scmp.eq.s32.totalorder %s16, 0
      %p160 = por %p158, %p159
      %p161 = scmp.le.s32.totalorder 1, %s10
      %p162 = scmp.lt.s32.totalorder %s10, 13
      %p163 = pnand %p161, %p162
      %p164 = pneg %p163
      // Predicated region
      $region9: #{tpu_custom_call.1} parent=5 // pred_check
        _
      $region10: #{tpu_custom_call.1} parent=5 // pred_check_branch
        %166 = sbr.rel (%p163) target = $region12
      $region11: #{tpu_custom_call.1} parent=5 // pred_region
        %s167 = ssub.s32 %s10, 1
        // Predicated region
        $region13: #{tpu_custom_call.1} parent=11 // pred_check
          %p168 = pneg %p125
        $region14: #{tpu_custom_call.1} parent=11 // pred_check_branch
          %170 = sbr.rel (%p168) target = $region16
        $region15: #{tpu_custom_call.1} parent=11 // pred_region
          _
        $region16: #{tpu_custom_call.1} parent=11 // pred_fallthru
          _
      $region12: #{tpu_custom_call.1} parent=5 // pred_fallthru
        _
      %p171 = scmp.lt.s32.totalorder %s10, 12
      // Predicated region
      $region17: #{tpu_custom_call.1} parent=5 // pred_check
        %p172 = pneg %p171
      $region18: #{tpu_custom_call.1} parent=5 // pred_check_branch
        %174 = sbr.rel (%p172) target = $region20
      $region19: #{tpu_custom_call.1} parent=5 // pred_region
        // Predicated region
        $region21: #{tpu_custom_call.1} parent=19 // pred_check
          %p175 = pneg %p42
        $region22: #{tpu_custom_call.1} parent=19 // pred_check_branch
          %177 = sbr.rel (%p175) target = $region24
        $region23: #{tpu_custom_call.1} parent=19 // pred_region
          %s178 = smul.u32 16, %s18
          %p179 = scmp.lt.s32.totalorder %s178, 47
          %s180 = scalar_select %p179, %s178, 47
          %s181 = smul.addr %s180, 4
          %s182 = scalar_lea.vmem %s0, %s181
          %s183 = smul.u32 16, %s18
        $region24: #{tpu_custom_call.1} parent=19 // pred_fallthru
          _
        // Predicated region
        $region25: #{tpu_custom_call.1} parent=19 // pred_check
          %p184 = pneg %p68
        $region26: #{tpu_custom_call.1} parent=19 // pred_check_branch
          %186 = sbr.rel (%p184) target = $region28
        $region27: #{tpu_custom_call.1} parent=19 // pred_region
          %s187 = smul.u32 16, %s18
          %p188 = scmp.lt.s32.totalorder %s187, 47
          %s189 = scalar_select %p188, %s187, 47
          %s190 = smul.addr %s189, 4
          %s191 = scalar_lea.vmem %s1, %s190
          %s192 = smul.u32 16, %s18
        $region28: #{tpu_custom_call.1} parent=19 // pred_fallthru
          _
        // Predicated region
        $region29: #{tpu_custom_call.1} parent=19 // pred_check
          %p193 = pneg %p98
        $region30: #{tpu_custom_call.1} parent=19 // pred_check_branch
          %195 = sbr.rel (%p193) target = $region32
        $region31: #{tpu_custom_call.1} parent=19 // pred_region
          %p196 = scmp.lt.s32.totalorder %s17, 2
          %s197 = scalar_select %p196, %s17, 2
          %s198 = smul.u32 16, %s197
          %p199 = scmp.lt.s32.totalorder %s198, 47
          %s200 = scalar_select %p199, %s198, 47
          %s201 = smul.addr %s200, 4
          %s202 = scalar_lea.vmem %s2, %s201
          %p203 = scmp.lt.s32.totalorder %s17, 2
          %s204 = scalar_select %p203, %s17, 2
          %s205 = smul.u32 16, %s204
        $region32: #{tpu_custom_call.1} parent=19 // pred_fallthru
          _
      $region20: #{tpu_custom_call.1} parent=5 // pred_fallthru
        _
      %p206 = scmp.le.s32.totalorder 1, %s10
      %p207 = scmp.lt.s32.totalorder %s10, 13
      %p208 = pnand %p206, %p207
      %p209 = pneg %p208
      // Predicated region
      $region33: #{tpu_custom_call.1} parent=5 // pred_check
        _
      $region34: #{tpu_custom_call.1} parent=5 // pred_check_branch
        %211 = sbr.rel (%p208) target = $region36
      $region35: #{tpu_custom_call.1} parent=5 // pred_region
        %s212 = ssub.s32 %s10, 1
        %s213 = smul.u32 16, %s20
        %p214 = scmp.lt.s32.totalorder %s213, 47
        %s215 = scalar_select %p214, %s213, 47
        %s216 = smul.addr %s215, 4
        %s217 = scalar_lea.vmem %s0, %s216
        %p218 = pneg %p48
        %p219 = pneg %p45
        %s220 = smul.u32 16, %s20
        %p221 = scmp.lt.s32.totalorder %s220, 47
        %s222 = scalar_select %p221, %s220, 47
        %s223 = smul.addr %s222, 4
        %s224 = scalar_lea.vmem %s1, %s223
        %p225 = pneg %p74
        %p226 = pneg %p71
        %p227 = scmp.lt.s32.totalorder %s19, 2
        %s228 = scalar_select %p227, %s19, 2
        %s229 = smul.u32 16, %s228
        %p230 = scmp.lt.s32.totalorder %s229, 47
        %s231 = scalar_select %p230, %s229, 47
        %s232 = smul.addr %s231, 4
        %s233 = scalar_lea.vmem %s2, %s232
        %p234 = pneg %p104
        %p235 = pneg %p101
        %p236 = pneg %p125
        %p237 = pneg %p122
        %p238 = pneg %p153
        %p239 = pneg %p150
        %s240 = sand.u32 %s140, 1
        %s241 = sand.u32 %s140, 1
        %s242 = smul.addr %s241, 128
        %s243 = scalar_lea.vmem [#allocation2], %s242
        %s244 = smul.u32 16, %s20
        %p245 = scmp.lt.s32.totalorder %s244, 47
        %s246 = scalar_select %p245, %s244, 47
        %s247 = smul.addr %s246, 4
        %s248 = scalar_lea.vmem %s0, %s247
        %s249 = smul.u32 16, %s20
        %s250 = smul.u32 16, %s20
        %p251 = scmp.lt.s32.totalorder %s250, 47
        %s252 = scalar_select %p251, %s250, 47
        %s253 = smul.addr %s252, 4
        %s254 = scalar_lea.vmem %s1, %s253
        %s255 = smul.u32 16, %s20
        %p256 = scmp.lt.s32.totalorder %s19, 2
        %s257 = scalar_select %p256, %s19, 2
        %s258 = smul.u32 16, %s257
        %p259 = scmp.lt.s32.totalorder %s258, 47
        %s260 = scalar_select %p259, %s258, 47
        %s261 = smul.addr %s260, 4
        %s262 = scalar_lea.vmem %s2, %s261
        %p263 = scmp.lt.s32.totalorder %s19, 2
        %s264 = scalar_select %p263, %s19, 2
        %s265 = smul.u32 16, %s264
        %s266 = smul.u32 16, %s20
        %p268 = scmp.lt.s32.totalorder %s19, 3
        // Predicated region
        $region37: #{tpu_custom_call.1} parent=35 // pred_check
          %p269 = pneg %p268
        $region38: #{tpu_custom_call.1} parent=35 // pred_check_branch
          %271 = sbr.rel (%p269) target = $region40
        $region39: #{tpu_custom_call.1} parent=35 // pred_region
          %v272 = vld [vmem:[%s248] sm:$0xf]
          %v273 = vld [vmem:[%s248 + $0x4] sm:$0xf]
          %v274 = vld [vmem:[%s248 + $0x8] sm:$0xf]
          %v275 = vld [vmem:[%s248 + $0xc] sm:$0xf]
          %v276 = vld [vmem:[%s248 + $0x10] sm:$0xf]
          %v277 = vld [vmem:[%s248 + $0x14] sm:$0xf]
          %v278 = vld [vmem:[%s248 + $0x18] sm:$0xf]
          %v279 = vld [vmem:[%s248 + $0x1c] sm:$0xf]
          %v280 = vld [vmem:[%s248 + $0x20] sm:$0xf]
          %v281 = vld [vmem:[%s248 + $0x24] sm:$0xf]
          %v282 = vld [vmem:[%s248 + $0x28] sm:$0xf]
          %v283 = vld [vmem:[%s248 + $0x2c] sm:$0xf]
          %v284 = vld [vmem:[%s248 + $0x30] sm:$0xf]
          %v285 = vld [vmem:[%s248 + $0x34] sm:$0xf]
          %v286 = vld [vmem:[%s248 + $0x38] sm:$0xf]
          %v287 = vld [vmem:[%s248 + $0x3c] sm:$0xf]
          %v288 = vld [vmem:[%s262] sm:$0xf]
          %v289 = vld [vmem:[%s262 + $0x4] sm:$0xf]
          %v290 = vld [vmem:[%s262 + $0x8] sm:$0xf]
          %v291 = vld [vmem:[%s262 + $0xc] sm:$0xf]
          %v292 = vld [vmem:[%s262 + $0x10] sm:$0xf]
          %v293 = vld [vmem:[%s262 + $0x14] sm:$0xf]
          %v294 = vld [vmem:[%s262 + $0x18] sm:$0xf]
          %v295 = vld [vmem:[%s262 + $0x1c] sm:$0xf]
          %v296 = vld [vmem:[%s262 + $0x20] sm:$0xf]
          %v297 = vld [vmem:[%s262 + $0x24] sm:$0xf]
          %v298 = vld [vmem:[%s262 + $0x28] sm:$0xf]
          %v299 = vld [vmem:[%s262 + $0x2c] sm:$0xf]
          %v300 = vld [vmem:[%s262 + $0x30] sm:$0xf]
          %v301 = vld [vmem:[%s262 + $0x34] sm:$0xf]
          %v302 = vld [vmem:[%s262 + $0x38] sm:$0xf]
          %v303 = vld [vmem:[%s262 + $0x3c] sm:$0xf]
          %v320 = vunpack.c.l.b16 %v272
          %v321 = vunpack.c.l.b16 %v273
          %v322 = vunpack.c.l.b16 %v274
          %v323 = vunpack.c.l.b16 %v275
          %v324 = vunpack.c.l.b16 %v276
          %v325 = vunpack.c.l.b16 %v277
          %v326 = vunpack.c.l.b16 %v278
          %v327 = vunpack.c.l.b16 %v279
          %v328 = vunpack.c.l.b16 %v280
          %v329 = vunpack.c.l.b16 %v281
          %v330 = vunpack.c.l.b16 %v282
          %v331 = vunpack.c.l.b16 %v283
          %v332 = vunpack.c.l.b16 %v284
          %v333 = vunpack.c.l.b16 %v285
          %v334 = vunpack.c.l.b16 %v286
          %v335 = vunpack.c.l.b16 %v287
          %v336 = vpack.c.b16 %v321, %v320
          %v337 = vpack.c.b16 %v323, %v322
          %v338 = vpack.c.b16 %v325, %v324
          %v339 = vpack.c.b16 %v327, %v326
          %v340 = vpack.c.b16 %v329, %v328
          %v341 = vpack.c.b16 %v331, %v330
          %v342 = vpack.c.b16 %v333, %v332
          %v343 = vpack.c.b16 %v335, %v334
          %v360 = vunpack.c.l.b16 %v288
          %v361 = vunpack.c.l.b16 %v289
          %v362 = vunpack.c.l.b16 %v290
          %v363 = vunpack.c.l.b16 %v291
          %v364 = vunpack.c.l.b16 %v292
          %v365 = vunpack.c.l.b16 %v293
          %v366 = vunpack.c.l.b16 %v294
          %v367 = vunpack.c.l.b16 %v295
          %v368 = vunpack.c.l.b16 %v296
          %v369 = vunpack.c.l.b16 %v297
          %v370 = vunpack.c.l.b16 %v298
          %v371 = vunpack.c.l.b16 %v299
          %v372 = vunpack.c.l.b16 %v300
          %v373 = vunpack.c.l.b16 %v301
          %v374 = vunpack.c.l.b16 %v302
          %v375 = vunpack.c.l.b16 %v303
          %v376 = vpack.c.b16 %v361, %v360
          %v377 = vpack.c.b16 %v363, %v362
          %v378 = vpack.c.b16 %v365, %v364
          %v379 = vpack.c.b16 %v367, %v366
          %v380 = vpack.c.b16 %v369, %v368
          %v381 = vpack.c.b16 %v371, %v370
          %v382 = vpack.c.b16 %v373, %v372
          %v383 = vpack.c.b16 %v375, %v374
          %vm384 = vcmask 523264
          %v386 = vsel %vm384, %v336, 0
          %v389 = vsel %vm384, %v337, 0
          %v392 = vsel %vm384, %v338, 0
          %v395 = vsel %vm384, %v339, 0
          %v398 = vsel %vm384, %v340, 0
          %v401 = vsel %vm384, %v341, 0
          %v404 = vsel %vm384, %v342, 0
          %v407 = vsel %vm384, %v343, 0
          %v410 = vsel %vm384, %v376, 0
          %v413 = vsel %vm384, %v377, 0
          %v416 = vsel %vm384, %v378, 0
          %v419 = vsel %vm384, %v379, 0
          %v422 = vsel %vm384, %v380, 0
          %v425 = vsel %vm384, %v381, 0
          %v428 = vsel %vm384, %v382, 0
          %v431 = vsel %vm384, %v383, 0
          %433 = vmatprep.subr.bf16.mxu0 0
          %434 = vmatpush1.bf16.xpose.msra.mxu0 %v410
          %435 = vmatprep.subr.bf16.mxu0 0
          %436 = vmatpush1.bf16.xpose.msra.mxu0 %v413
          %437 = vmatprep.subr.bf16.mxu0 0
          %438 = vmatpush1.bf16.xpose.msra.mxu0 %v416
          %439 = vmatprep.subr.bf16.mxu0 0
          %440 = vmatpush1.bf16.xpose.msra.mxu0 %v419
          %441 = vmatprep.subr.bf16.mxu0 0
          %442 = vmatpush1.bf16.xpose.msra.mxu0 %v422
          %443 = vmatprep.subr.bf16.mxu0 0
          %444 = vmatpush1.bf16.xpose.msra.mxu0 %v425
          %445 = vmatprep.subr.bf16.mxu0 0
          %446 = vmatpush1.bf16.xpose.msra.mxu0 %v428
          %447 = vmatprep.subr.bf16.mxu0 0
          %448 = vmatpush1.bf16.xpose.msra.mxu0 %v431
          %449 = vmatprep.subr.bf16.mxu0 0
          %450 = vmatpush1.bf16.xpose.msra.mxu0 0
          %451 = vmatprep.subr.bf16.mxu0 0
          %452 = vmatpush1.bf16.xpose.msra.mxu0 0
          %453 = vmatprep.subr.bf16.mxu0 0
          %454 = vmatpush1.bf16.xpose.msra.mxu0 0
          %455 = vmatprep.subr.bf16.mxu0 0
          %456 = vmatpush1.bf16.xpose.msra.mxu0 0
          %457 = vmatprep.subr.bf16.mxu0 0
          %458 = vmatpush1.bf16.xpose.msra.mxu0 0
          %459 = vmatprep.subr.bf16.mxu0 0
          %460 = vmatpush1.bf16.xpose.msra.mxu0 0
          %461 = vmatprep.subr.bf16.mxu0 0
          %462 = vmatpush1.bf16.xpose.msra.mxu0 0
          %463 = vmatprep.subr.bf16.mxu0 0
          %464 = vmatpush1.bf16.xpose.msra.mxu0 0
          %465 = vmatprep.mubr.bf16.mxu0 0
          %466 = vmatmul.mubr.bf16.gmra.mrb[0].mxu0 %v386
          %v467 = vpop.f32.mrb[0].mxu0
          %v468 = vadd.f32 0.0, %v467
          %v469 = vpop.f32.mrb[0].mxu0
          %v470 = vpop.f32.mrb[0].mxu0
          %v471 = vadd.f32 0.0, %v470
          %v472 = vpop.f32.mrb[0].mxu0
          %473 = vmatprep.mubr.bf16.mxu0 0
          %474 = vmatmul.mubr.bf16.gmra.mrb[0].mxu0 %v389
          %v475 = vpop.f32.mrb[0].mxu0
          %v476 = vadd.f32 0.0, %v475
          %v477 = vpop.f32.mrb[0].mxu0
          %v478 = vpop.f32.mrb[0].mxu0
          %v479 = vadd.f32 0.0, %v478
          %v480 = vpop.f32.mrb[0].mxu0
          %481 = vmatprep.mubr.bf16.mxu0 0
          %482 = vmatmul.mubr.bf16.gmra.mrb[0].mxu0 %v392
          %v483 = vpop.f32.mrb[0].mxu0
          %v484 = vadd.f32 0.0, %v483
          %v485 = vpop.f32.mrb[0].mxu0
          %v486 = vpop.f32.mrb[0].mxu0
          %v487 = vadd.f32 0.0, %v486
          %v488 = vpop.f32.mrb[0].mxu0
          %489 = vmatprep.mubr.bf16.mxu0 0
          %490 = vmatmul.mubr.bf16.gmra.mrb[0].mxu0 %v395
          %v491 = vpop.f32.mrb[0].mxu0
          %v492 = vadd.f32 0.0, %v491
          %v493 = vpop.f32.mrb[0].mxu0
          %v494 = vpop.f32.mrb[0].mxu0
          %v495 = vadd.f32 0.0, %v494
          %v496 = vpop.f32.mrb[0].mxu0
          %497 = vmatprep.mubr.bf16.mxu0 0
          %498 = vmatmul.mubr.bf16.gmra.mrb[0].mxu0 %v398
          %v499 = vpop.f32.mrb[0].mxu0
          %v500 = vadd.f32 0.0, %v499
          %v501 = vpop.f32.mrb[0].mxu0
          %v502 = vpop.f32.mrb[0].mxu0
          %v503 = vadd.f32 0.0, %v502
          %v504 = vpop.f32.mrb[0].mxu0
          %505 = vmatprep.mubr.bf16.mxu0 0
          %506 = vmatmul.mubr.bf16.gmra.mrb[0].mxu0 %v401
          %v507 = vpop.f32.mrb[0].mxu0
          %v508 = vadd.f32 0.0, %v507
          %v509 = vpop.f32.mrb[0].mxu0
          %v510 = vpop.f32.mrb[0].mxu0
          %v511 = vadd.f32 0.0, %v510
          %v512 = vpop.f32.mrb[0].mxu0
          %513 = vmatprep.mubr.bf16.mxu0 0
          %514 = vmatmul.mubr.bf16.gmra.mrb[0].mxu0 %v404
          %v515 = vpop.f32.mrb[0].mxu0
          %v516 = vadd.f32 0.0, %v515
          %v517 = vpop.f32.mrb[0].mxu0
          %v518 = vpop.f32.mrb[0].mxu0
          %v519 = vadd.f32 0.0, %v518
          %v520 = vpop.f32.mrb[0].mxu0
          %521 = vmatprep.mubr.bf16.mxu0 0
          %522 = vmatmul.mubr.bf16.gmra.mrb[0].mxu0 %v407
          %v523 = vpop.f32.mrb[0].mxu0
          %v524 = vadd.f32 0.0, %v523
          %v525 = vpop.f32.mrb[0].mxu0
          %v526 = vpop.f32.mrb[0].mxu0
          %v527 = vadd.f32 0.0, %v526
          %v528 = vpop.f32.mrb[0].mxu0
          %529 = vdwg.mxu0
          %530 = vst [vmem:[%s243] sm:$0xff] %v468
          %531 = vst [vmem:[%s243 + $0x8] sm:$0xff] %v471
          %532 = vst [vmem:[%s243 + $0x10] sm:$0xff] %v476
          %533 = vst [vmem:[%s243 + $0x18] sm:$0xff] %v479
          %534 = vst [vmem:[%s243 + $0x20] sm:$0xff] %v484
          %535 = vst [vmem:[%s243 + $0x28] sm:$0xff] %v487
          %536 = vst [vmem:[%s243 + $0x30] sm:$0xff] %v492
          %537 = vst [vmem:[%s243 + $0x38] sm:$0xff] %v495
          %538 = vst [vmem:[%s243 + $0x40] sm:$0xff] %v500
          %539 = vst [vmem:[%s243 + $0x48] sm:$0xff] %v503
          %540 = vst [vmem:[%s243 + $0x50] sm:$0xff] %v508
          %541 = vst [vmem:[%s243 + $0x58] sm:$0xff] %v511
          %542 = vst [vmem:[%s243 + $0x60] sm:$0xff] %v516
          %543 = vst [vmem:[%s243 + $0x68] sm:$0xff] %v519
          %544 = vst [vmem:[%s243 + $0x70] sm:$0xff] %v524
          %545 = vst [vmem:[%s243 + $0x78] sm:$0xff] %v527
        $region40: #{tpu_custom_call.1} parent=35 // pred_fallthru
          _
        %p546 = scmp.ge.s32.totalorder %s19, 3
        // Predicated region
        $region41: #{tpu_custom_call.1} parent=35 // pred_check
          %p547 = pneg %p546
        $region42: #{tpu_custom_call.1} parent=35 // pred_check_branch
          %549 = sbr.rel (%p547) target = $region44
        $region43: #{tpu_custom_call.1} parent=35 // pred_region
          %v550 = vld [vmem:[%s254] sm:$0xf]
          %v551 = vld [vmem:[%s254 + $0x4] sm:$0xf]
          %v552 = vld [vmem:[%s254 + $0x8] sm:$0xf]
          %v553 = vld [vmem:[%s254 + $0xc] sm:$0xf]
          %v554 = vld [vmem:[%s254 + $0x10] sm:$0xf]
          %v555 = vld [vmem:[%s254 + $0x14] sm:$0xf]
          %v556 = vld [vmem:[%s254 + $0x18] sm:$0xf]
          %v557 = vld [vmem:[%s254 + $0x1c] sm:$0xf]
          %v558 = vld [vmem:[%s254 + $0x20] sm:$0xf]
          %v559 = vld [vmem:[%s254 + $0x24] sm:$0xf]
          %v560 = vld [vmem:[%s254 + $0x28] sm:$0xf]
          %v561 = vld [vmem:[%s254 + $0x2c] sm:$0xf]
          %v562 = vld [vmem:[%s254 + $0x30] sm:$0xf]
          %v563 = vld [vmem:[%s254 + $0x34] sm:$0xf]
          %v564 = vld [vmem:[%s254 + $0x38] sm:$0xf]
          %v565 = vld [vmem:[%s254 + $0x3c] sm:$0xf]
          %v566 = vld [vmem:[%s3] sm:$0xf]
          %v567 = vld [vmem:[%s3 + $0x4] sm:$0xf]
          %v568 = vld [vmem:[%s3 + $0x8] sm:$0xf]
          %v569 = vld [vmem:[%s3 + $0xc] sm:$0xf]
          %v570 = vld [vmem:[%s3 + $0x10] sm:$0xf]
          %v571 = vld [vmem:[%s3 + $0x14] sm:$0xf]
          %v572 = vld [vmem:[%s3 + $0x18] sm:$0xf]
          %v573 = vld [vmem:[%s3 + $0x1c] sm:$0xf]
          %v574 = vld [vmem:[%s3 + $0x20] sm:$0xf]
          %v575 = vld [vmem:[%s3 + $0x24] sm:$0xf]
          %v576 = vld [vmem:[%s3 + $0x28] sm:$0xf]
          %v577 = vld [vmem:[%s3 + $0x2c] sm:$0xf]
          %v578 = vld [vmem:[%s3 + $0x30] sm:$0xf]
          %v579 = vld [vmem:[%s3 + $0x34] sm:$0xf]
          %v580 = vld [vmem:[%s3 + $0x38] sm:$0xf]
          %v581 = vld [vmem:[%s3 + $0x3c] sm:$0xf]
          %v598 = vunpack.c.l.b16 %v550
          %v599 = vunpack.c.l.b16 %v551
          %v600 = vunpack.c.l.b16 %v552
          %v601 = vunpack.c.l.b16 %v553
          %v602 = vunpack.c.l.b16 %v554
          %v603 = vunpack.c.l.b16 %v555
          %v604 = vunpack.c.l.b16 %v556
          %v605 = vunpack.c.l.b16 %v557
          %v606 = vunpack.c.l.b16 %v558
          %v607 = vunpack.c.l.b16 %v559
          %v608 = vunpack.c.l.b16 %v560
          %v609 = vunpack.c.l.b16 %v561
          %v610 = vunpack.c.l.b16 %v562
          %v611 = vunpack.c.l.b16 %v563
          %v612 = vunpack.c.l.b16 %v564
          %v613 = vunpack.c.l.b16 %v565
          %v614 = vpack.c.b16 %v599, %v598
          %v615 = vpack.c.b16 %v601, %v600
          %v616 = vpack.c.b16 %v603, %v602
          %v617 = vpack.c.b16 %v605, %v604
          %v618 = vpack.c.b16 %v607, %v606
          %v619 = vpack.c.b16 %v609, %v608
          %v620 = vpack.c.b16 %v611, %v610
          %v621 = vpack.c.b16 %v613, %v612
          %v638 = vunpack.c.l.b16 %v566
          %v639 = vunpack.c.l.b16 %v567
          %v640 = vunpack.c.l.b16 %v568
          %v641 = vunpack.c.l.b16 %v569
          %v642 = vunpack.c.l.b16 %v570
          %v643 = vunpack.c.l.b16 %v571
          %v644 = vunpack.c.l.b16 %v572
          %v645 = vunpack.c.l.b16 %v573
          %v646 = vunpack.c.l.b16 %v574
          %v647 = vunpack.c.l.b16 %v575
          %v648 = vunpack.c.l.b16 %v576
          %v649 = vunpack.c.l.b16 %v577
          %v650 = vunpack.c.l.b16 %v578
          %v651 = vunpack.c.l.b16 %v579
          %v652 = vunpack.c.l.b16 %v580
          %v653 = vunpack.c.l.b16 %v581
          %v654 = vpack.c.b16 %v639, %v638
          %v655 = vpack.c.b16 %v641, %v640
          %v656 = vpack.c.b16 %v643, %v642
          %v657 = vpack.c.b16 %v645, %v644
          %v658 = vpack.c.b16 %v647, %v646
          %v659 = vpack.c.b16 %v649, %v648
          %v660 = vpack.c.b16 %v651, %v650
          %v661 = vpack.c.b16 %v653, %v652
          %vm662 = vcmask 261120
          %v664 = vsel %vm662, %v614, 0
          %v667 = vsel %vm662, %v615, 0
          %v670 = vsel %vm662, %v616, 0
          %v673 = vsel %vm662, %v617, 0
          %v676 = vsel %vm662, %v618, 0
          %v679 = vsel %vm662, %v619, 0
          %v682 = vsel %vm662, %v620, 0
          %v685 = vsel %vm662, %v621, 0
          %v688 = vsel %vm662, %v654, 0
          %v691 = vsel %vm662, %v655, 0
          %v694 = vsel %vm662, %v656, 0
          %v697 = vsel %vm662, %v657, 0
          %v700 = vsel %vm662, %v658, 0
          %v703 = vsel %vm662, %v659, 0
          %v706 = vsel %vm662, %v660, 0
          %v709 = vsel %vm662, %v661, 0
          %711 = vmatprep.subr.bf16.mxu0 0
          %712 = vmatpush1.bf16.xpose.msra.mxu0 %v688
          %713 = vmatprep.subr.bf16.mxu0 0
          %714 = vmatpush1.bf16.xpose.msra.mxu0 %v691
          %715 = vmatprep.subr.bf16.mxu0 0
          %716 = vmatpush1.bf16.xpose.msra.mxu0 %v694
          %717 = vmatprep.subr.bf16.mxu0 0
          %718 = vmatpush1.bf16.xpose.msra.mxu0 %v697
          %719 = vmatprep.subr.bf16.mxu0 0
          %720 = vmatpush1.bf16.xpose.msra.mxu0 %v700
          %721 = vmatprep.subr.bf16.mxu0 0
          %722 = vmatpush1.bf16.xpose.msra.mxu0 %v703
          %723 = vmatprep.subr.bf16.mxu0 0
          %724 = vmatpush1.bf16.xpose.msra.mxu0 %v706
          %725 = vmatprep.subr.bf16.mxu0 0
          %726 = vmatpush1.bf16.xpose.msra.mxu0 %v709
          %727 = vmatprep.subr.bf16.mxu0 0
          %728 = vmatpush1.bf16.xpose.msra.mxu0 0
          %729 = vmatprep.subr.bf16.mxu0 0
          %730 = vmatpush1.bf16.xpose.msra.mxu0 0
          %731 = vmatprep.subr.bf16.mxu0 0
          %732 = vmatpush1.bf16.xpose.msra.mxu0 0
          %733 = vmatprep.subr.bf16.mxu0 0
          %734 = vmatpush1.bf16.xpose.msra.mxu0 0
          %735 = vmatprep.subr.bf16.mxu0 0
          %736 = vmatpush1.bf16.xpose.msra.mxu0 0
          %737 = vmatprep.subr.bf16.mxu0 0
          %738 = vmatpush1.bf16.xpose.msra.mxu0 0
          %739 = vmatprep.subr.bf16.mxu0 0
          %740 = vmatpush1.bf16.xpose.msra.mxu0 0
          %741 = vmatprep.subr.bf16.mxu0 0
          %742 = vmatpush1.bf16.xpose.msra.mxu0 0
          %743 = vmatprep.mubr.bf16.mxu0 0
          %744 = vmatmul.mubr.bf16.gmra.mrb[0].mxu0 %v664
          %v745 = vpop.f32.mrb[0].mxu0
          %v746 = vadd.f32 0.0, %v745
          %v747 = vpop.f32.mrb[0].mxu0
          %v748 = vpop.f32.mrb[0].mxu0
          %v749 = vadd.f32 0.0, %v748
          %v750 = vpop.f32.mrb[0].mxu0
          %751 = vmatprep.mubr.bf16.mxu0 0
          %752 = vmatmul.mubr.bf16.gmra.mrb[0].mxu0 %v667
          %v753 = vpop.f32.mrb[0].mxu0
          %v754 = vadd.f32 0.0, %v753
          %v755 = vpop.f32.mrb[0].mxu0
          %v756 = vpop.f32.mrb[0].mxu0
          %v757 = vadd.f32 0.0, %v756
          %v758 = vpop.f32.mrb[0].mxu0
          %759 = vmatprep.mubr.bf16.mxu0 0
          %760 = vmatmul.mubr.bf16.gmra.mrb[0].mxu0 %v670
          %v761 = vpop.f32.mrb[0].mxu0
          %v762 = vadd.f32 0.0, %v761
          %v763 = vpop.f32.mrb[0].mxu0
          %v764 = vpop.f32.mrb[0].mxu0
          %v765 = vadd.f32 0.0, %v764
          %v766 = vpop.f32.mrb[0].mxu0
          %767 = vmatprep.mubr.bf16.mxu0 0
          %768 = vmatmul.mubr.bf16.gmra.mrb[0].mxu0 %v673
          %v769 = vpop.f32.mrb[0].mxu0
          %v770 = vadd.f32 0.0, %v769
          %v771 = vpop.f32.mrb[0].mxu0
          %v772 = vpop.f32.mrb[0].mxu0
          %v773 = vadd.f32 0.0, %v772
          %v774 = vpop.f32.mrb[0].mxu0
          %775 = vmatprep.mubr.bf16.mxu0 0
          %776 = vmatmul.mubr.bf16.gmra.mrb[0].mxu0 %v676
          %v777 = vpop.f32.mrb[0].mxu0
          %v778 = vadd.f32 0.0, %v777
          %v779 = vpop.f32.mrb[0].mxu0
          %v780 = vpop.f32.mrb[0].mxu0
          %v781 = vadd.f32 0.0, %v780
          %v782 = vpop.f32.mrb[0].mxu0
          %783 = vmatprep.mubr.bf16.mxu0 0
          %784 = vmatmul.mubr.bf16.gmra.mrb[0].mxu0 %v679
          %v785 = vpop.f32.mrb[0].mxu0
          %v786 = vadd.f32 0.0, %v785
          %v787 = vpop.f32.mrb[0].mxu0
          %v788 = vpop.f32.mrb[0].mxu0
          %v789 = vadd.f32 0.0, %v788
          %v790 = vpop.f32.mrb[0].mxu0
          %791 = vmatprep.mubr.bf16.mxu0 0
          %792 = vmatmul.mubr.bf16.gmra.mrb[0].mxu0 %v682
          %v793 = vpop.f32.mrb[0].mxu0
          %v794 = vadd.f32 0.0, %v793
          %v795 = vpop.f32.mrb[0].mxu0
          %v796 = vpop.f32.mrb[0].mxu0
          %v797 = vadd.f32 0.0, %v796
          %v798 = vpop.f32.mrb[0].mxu0
          %799 = vmatprep.mubr.bf16.mxu0 0
          %800 = vmatmul.mubr.bf16.gmra.mrb[0].mxu0 %v685
          %v801 = vpop.f32.mrb[0].mxu0
          %v802 = vadd.f32 0.0, %v801
          %v803 = vpop.f32.mrb[0].mxu0
          %v804 = vpop.f32.mrb[0].mxu0
          %v805 = vadd.f32 0.0, %v804
          %v806 = vpop.f32.mrb[0].mxu0
          %807 = vdwg.mxu0
          %808 = vst [vmem:[%s243] sm:$0xff] %v746
          %809 = vst [vmem:[%s243 + $0x8] sm:$0xff] %v749
          %810 = vst [vmem:[%s243 + $0x10] sm:$0xff] %v754
          %811 = vst [vmem:[%s243 + $0x18] sm:$0xff] %v757
          %812 = vst [vmem:[%s243 + $0x20] sm:$0xff] %v762
          %813 = vst [vmem:[%s243 + $0x28] sm:$0xff] %v765
          %814 = vst [vmem:[%s243 + $0x30] sm:$0xff] %v770
          %815 = vst [vmem:[%s243 + $0x38] sm:$0xff] %v773
          %816 = vst [vmem:[%s243 + $0x40] sm:$0xff] %v778
          %817 = vst [vmem:[%s243 + $0x48] sm:$0xff] %v781
          %818 = vst [vmem:[%s243 + $0x50] sm:$0xff] %v786
          %819 = vst [vmem:[%s243 + $0x58] sm:$0xff] %v789
          %820 = vst [vmem:[%s243 + $0x60] sm:$0xff] %v794
          %821 = vst [vmem:[%s243 + $0x68] sm:$0xff] %v797
          %822 = vst [vmem:[%s243 + $0x70] sm:$0xff] %v802
          %823 = vst [vmem:[%s243 + $0x78] sm:$0xff] %v805
        $region44: #{tpu_custom_call.1} parent=35 // pred_fallthru
          _
        %s824 = sand.u32 %s140, 1
        %s825 = sand.u32 %s140, 1
        %s826 = smul.addr %s825, 128
        %s827 = scalar_lea.vmem [#allocation2], %s826
        // Predicated region
        $region45: #{tpu_custom_call.1} parent=35 // pred_check
          %p828 = pneg %p150
        $region46: #{tpu_custom_call.1} parent=35 // pred_check_branch
          %830 = sbr.rel (%p828) target = $region48
        $region47: #{tpu_custom_call.1} parent=35 // pred_region
          %s831 = smul.u32 16, %s20
          %s832 = smul.addr %s831, 4
          %s833 = sadd.s32 %s19, %s832
          %s834 = smul.addr %s833, 8
          %s835 = scalar_lea.vmem %s4, %s834
          // Predicated region
          $region49: #{tpu_custom_call.1} parent=47 // pred_check
            _
          $region50: #{tpu_custom_call.1} parent=47 // pred_check_branch
            %837 = sbr.rel (0) target = $region52
          $region51: #{tpu_custom_call.1} parent=47 // pred_region
            // Predicated region
            $region53: #{tpu_custom_call.1} parent=51 // pred_check
              _
            $region54: #{tpu_custom_call.1} parent=51 // pred_check_branch
              %839 = sbr.rel (0) target = $region56
            $region55: #{tpu_custom_call.1} parent=51 // pred_region
              // Predicated region
              $region68: #{tpu_custom_call.1} parent=55 // pred_check
                _
              $region69: #{tpu_custom_call.1} parent=55 // pred_check_branch
                %884 = sbr.rel (0) target = $region71
              $region70: #{tpu_custom_call.1} parent=55 // pred_region
                loop: start=0, step=1, limit=1
                $region72: #{tpu_custom_call.1} parent=70 // loop_pre_header
                  _
                $region73: #{tpu_custom_call.1} parent=70 // loop_header
                  %s886 = sphi 0, %s890
                  %p887 = scmp.ge.s32.totalorder %s886, 1
                  %s891 = sphi %s827, %s827
                  %s892 = sphi %s835, %s835
                $region74: #{tpu_custom_call.1} parent=70 // loop_header_branch
                  %889 = sbr.rel (%p887) target = $region78
                $region75: #{tpu_custom_call.1} parent=70 // loop_body
                  %v893 = vld [vmem:[%s891] sm:$0xff]
                  %894 = vst [vmem:[%s892] sm:$0xff] %v893
                  %v895 = vld [vmem:[%s891 + $0x8] sm:$0xff]
                  %896 = vst [vmem:[%s892 + $0x20] sm:$0xff] %v895
                  %v897 = vld [vmem:[%s891 + $0x10] sm:$0xff]
                  %898 = vst [vmem:[%s892 + $0x40] sm:$0xff] %v897
                  %v899 = vld [vmem:[%s891 + $0x18] sm:$0xff]
                  %900 = vst [vmem:[%s892 + $0x60] sm:$0xff] %v899
                  %v901 = vld [vmem:[%s891 + $0x20] sm:$0xff]
                  %902 = vst [vmem:[%s892 + $0x80] sm:$0xff] %v901
                  %v903 = vld [vmem:[%s891 + $0x28] sm:$0xff]
                  %904 = vst [vmem:[%s892 + $0xa0] sm:$0xff] %v903
                  %v905 = vld [vmem:[%s891 + $0x30] sm:$0xff]
                  %906 = vst [vmem:[%s892 + $0xc0] sm:$0xff] %v905
                  %v907 = vld [vmem:[%s891 + $0x38] sm:$0xff]
                  %908 = vst [vmem:[%s892 + $0xe0] sm:$0xff] %v907
                  %v909 = vld [vmem:[%s891 + $0x40] sm:$0xff]
                  %910 = vst [vmem:[%s892 + $0x100] sm:$0xff] %v909
                  %v911 = vld [vmem:[%s891 + $0x48] sm:$0xff]
                  %912 = vst [vmem:[%s892 + $0x120] sm:$0xff] %v911
                  %v913 = vld [vmem:[%s891 + $0x50] sm:$0xff]
                  %914 = vst [vmem:[%s892 + $0x140] sm:$0xff] %v913
                  %v915 = vld [vmem:[%s891 + $0x58] sm:$0xff]
                  %916 = vst [vmem:[%s892 + $0x160] sm:$0xff] %v915
                  %v917 = vld [vmem:[%s891 + $0x60] sm:$0xff]
                  %918 = vst [vmem:[%s892 + $0x180] sm:$0xff] %v917
                  %v919 = vld [vmem:[%s891 + $0x68] sm:$0xff]
                  %920 = vst [vmem:[%s892 + $0x1a0] sm:$0xff] %v919
                  %v921 = vld [vmem:[%s891 + $0x70] sm:$0xff]
                  %922 = vst [vmem:[%s892 + $0x1c0] sm:$0xff] %v921
                  %v923 = vld [vmem:[%s891 + $0x78] sm:$0xff]
                  %924 = vst [vmem:[%s892 + $0x1e0] sm:$0xff] %v923
                $region76: #{tpu_custom_call.1} parent=70 // loop_footer
                  %s890 = sadd.s32 1, %s886
                $region77: #{tpu_custom_call.1} parent=70 // loop_footer_branch
                  %885 = sbr.rel target = $region73
                $region78: #{tpu_custom_call.1} parent=70 // loop_exit
                  _
              $region71: #{tpu_custom_call.1} parent=55 // pred_fallthru
                _
              // Predicated region
              $region79: #{tpu_custom_call.1} parent=55 // pred_check
                _
              $region80: #{tpu_custom_call.1} parent=55 // pred_check_branch
                %926 = sbr.rel target = $region82
              $region81: #{tpu_custom_call.1} parent=55 // pred_region
                _
              $region82: #{tpu_custom_call.1} parent=55 // pred_fallthru
                _
            $region56: #{tpu_custom_call.1} parent=51 // pred_fallthru
              _
            // Predicated region
            $region57: #{tpu_custom_call.1} parent=51 // pred_check
              _
            $region58: #{tpu_custom_call.1} parent=51 // pred_check_branch
              %841 = sbr.rel target = $region60
            $region59: #{tpu_custom_call.1} parent=51 // pred_region
              loop: start=0, step=1, limit=1
              $region61: #{tpu_custom_call.1} parent=59 // loop_pre_header
                _
              $region62: #{tpu_custom_call.1} parent=59 // loop_header
                %s844 = sphi 0, %s848
                %p845 = scmp.ge.s32.totalorder %s844, 1
                %s849 = sphi %s827, %s827
                %s850 = sphi %s835, %s835
              $region63: #{tpu_custom_call.1} parent=59 // loop_header_branch
                %847 = sbr.rel (%p845) target = $region67
              $region64: #{tpu_custom_call.1} parent=59 // loop_body
                %v851 = vld [vmem:[%s849] sm:$0xff]
                %852 = vst [vmem:[%s850] sm:$0xff] %v851
                %v853 = vld [vmem:[%s849 + $0x8] sm:$0xff]
                %854 = vst [vmem:[%s850 + $0x20] sm:$0xff] %v853
                %v855 = vld [vmem:[%s849 + $0x10] sm:$0xff]
                %856 = vst [vmem:[%s850 + $0x40] sm:$0xff] %v855
                %v857 = vld [vmem:[%s849 + $0x18] sm:$0xff]
                %858 = vst [vmem:[%s850 + $0x60] sm:$0xff] %v857
                %v859 = vld [vmem:[%s849 + $0x20] sm:$0xff]
                %860 = vst [vmem:[%s850 + $0x80] sm:$0xff] %v859
                %v861 = vld [vmem:[%s849 + $0x28] sm:$0xff]
                %862 = vst [vmem:[%s850 + $0xa0] sm:$0xff] %v861
                %v863 = vld [vmem:[%s849 + $0x30] sm:$0xff]
                %864 = vst [vmem:[%s850 + $0xc0] sm:$0xff] %v863
                %v865 = vld [vmem:[%s849 + $0x38] sm:$0xff]
                %866 = vst [vmem:[%s850 + $0xe0] sm:$0xff] %v865
                %v867 = vld [vmem:[%s849 + $0x40] sm:$0xff]
                %868 = vst [vmem:[%s850 + $0x100] sm:$0xff] %v867
                %v869 = vld [vmem:[%s849 + $0x48] sm:$0xff]
                %870 = vst [vmem:[%s850 + $0x120] sm:$0xff] %v869
                %v871 = vld [vmem:[%s849 + $0x50] sm:$0xff]
                %872 = vst [vmem:[%s850 + $0x140] sm:$0xff] %v871
                %v873 = vld [vmem:[%s849 + $0x58] sm:$0xff]
                %874 = vst [vmem:[%s850 + $0x160] sm:$0xff] %v873
                %v875 = vld [vmem:[%s849 + $0x60] sm:$0xff]
                %876 = vst [vmem:[%s850 + $0x180] sm:$0xff] %v875
                %v877 = vld [vmem:[%s849 + $0x68] sm:$0xff]
                %878 = vst [vmem:[%s850 + $0x1a0] sm:$0xff] %v877
                %v879 = vld [vmem:[%s849 + $0x70] sm:$0xff]
                %880 = vst [vmem:[%s850 + $0x1c0] sm:$0xff] %v879
                %v881 = vld [vmem:[%s849 + $0x78] sm:$0xff]
                %882 = vst [vmem:[%s850 + $0x1e0] sm:$0xff] %v881
              $region65: #{tpu_custom_call.1} parent=59 // loop_footer
                %s848 = sadd.s32 1, %s844
              $region66: #{tpu_custom_call.1} parent=59 // loop_footer_branch
                %843 = sbr.rel target = $region62
              $region67: #{tpu_custom_call.1} parent=59 // loop_exit
                _
            $region60: #{tpu_custom_call.1} parent=51 // pred_fallthru
              _
          $region52: #{tpu_custom_call.1} parent=47 // pred_fallthru
            _
          %927 = vnop
        $region48: #{tpu_custom_call.1} parent=35 // pred_fallthru
          _
      $region36: #{tpu_custom_call.1} parent=5 // pred_fallthru
        _
      %p928 = scmp.le.s32.totalorder 2, %s10
      // Predicated region
      $region83: #{tpu_custom_call.1} parent=5 // pred_check
        %p929 = pneg %p928
      $region84: #{tpu_custom_call.1} parent=5 // pred_check_branch
        %931 = sbr.rel (%p929) target = $region86
      $region85: #{tpu_custom_call.1} parent=5 // pred_region
        %s932 = ssub.s32 %s10, 2
        // Predicated region
        $region87: #{tpu_custom_call.1} parent=85 // pred_check
          %p933 = pneg %p156
        $region88: #{tpu_custom_call.1} parent=85 // pred_check_branch
          %935 = sbr.rel (%p933) target = $region90
        $region89: #{tpu_custom_call.1} parent=85 // pred_region
          %s936 = sand.u32 %s141, 1
          %s937 = sand.u32 %s141, 1
          %s938 = smul.addr %s937, 128
          %s939 = scalar_lea.vmem [#allocation2], %s938
        $region90: #{tpu_custom_call.1} parent=85 // pred_fallthru
          _
      $region86: #{tpu_custom_call.1} parent=5 // pred_fallthru
        _
    $region6: #{tpu_custom_call.1} parent=1 // loop_footer
      %s14 = sadd.s32 1, %s10
    $region7: #{tpu_custom_call.1} parent=1 // loop_footer_branch
      %9 = sbr.rel target = $region3
    $region8: #{tpu_custom_call.1} parent=1 // loop_exit
      _

</llo_original>
